<compile_context>
chip_gen: v6e
topology: v6e:2x2x1
jax: 0.10.0
libtpu: 0.0.40
codegen_flags: <defaults>
</compile_context>

<pallas_src>
import math

import jax
import jax.numpy as jnp
from jax.experimental import pallas as pl
from jax.experimental.pallas import tpu as pltpu

_A = math.sqrt(2.0 / math.pi)          # sqrt(2/pi)
# GELU(x) = 0.5*x*(1 + tanh(A*(x + 0.044715*x^3))) == x * sigmoid(2A*x + 2A*0.044715*x^3)
_TWO_A = 2.0 * _A
_TWO_B = 2.0 * 0.044715 * _A

_LANES = 128                            # last dim of slab -> vreg lane axis
_TARGET_TILE_BYTES = 8 * 1024 * 1024    # ~8 MiB of input per grid step
_MIN_SPLIT_TILE_BYTES = 1 * 1024 * 1024 # don't shrink below ~1 MiB for the megacore split
_VMEM_LIMIT_BYTES = 48 * 1024 * 1024    # 2x(in)+2x(out) 8 MiB buffers = 32 MiB < 48 MiB


def _gelu_kernel(x_ref, o_ref):
    xf = x_ref[...].astype(jnp.float32)
    # Horner form with folded constants: z = 2*sqrt(2/pi)*(x + 0.044715*x^3)
    z = xf * (_TWO_A + _TWO_B * (xf * xf))
    # Exact identity: 0.5*x*(1+tanh(z/2... )) -> x*sigmoid(z); single exp + exact div.
    o_ref[...] = (xf / (1.0 + jnp.exp(-z))).astype(o_ref.dtype)


def _gelu_jnp(x):
    # Same math, plain jnp; used for the <128-element unaligned tail only.
    xf = x.astype(jnp.float32)
    z = xf * (_TWO_A + _TWO_B * (xf * xf))
    return (xf / (1.0 + jnp.exp(-z))).astype(x.dtype)


def _gelu_slab(x2d):
    """Run the Pallas kernel over a contiguous, lane-dense (rows, 128) slab."""
    rows, lanes = x2d.shape
    dtype = x2d.dtype
    itemsize = jnp.dtype(dtype).itemsize

    # Big row tiles amortize the ~0.35us per-grid-step pipeline overhead.
    target_rows = max(8, _TARGET_TILE_BYTES // (lanes * itemsize))
    row_tile = min(rows, target_rows)
    if row_tile >= 8:
        row_tile = (row_tile // 8) * 8   # sublane-align

    # v7x megacore: dimension_semantics=("parallel",) only helps if there are
    # >=2 grid steps to shard across the 2 TensorCores. Cap the tile so
    # medium tensors split in two, as long as each half is still >= ~1 MiB.
    half_rows = 8 * pl.cdiv(pl.cdiv(rows, 2), 8)
    if half_rows * lanes * itemsize >= _MIN_SPLIT_TILE_BYTES:
        row_tile = min(row_tile, half_rows)

    grid = (pl.cdiv(rows, row_tile),)    # ragged last block masked by Pallas
    n_elems = rows * lanes

    return pl.pallas_call(
        _gelu_kernel,
        out_shape=jax.ShapeDtypeStruct((rows, lanes), dtype),
        grid=grid,
        in_specs=[pl.BlockSpec((row_tile, lanes), lambda i: (i, 0))],
        out_specs=pl.BlockSpec((row_tile, lanes), lambda i: (i, 0)),
        compiler_params=pltpu.CompilerParams(
            dimension_semantics=("parallel",),        # megacore-shardable on v7x
            vmem_limit_bytes=_VMEM_LIMIT_BYTES,
            allow_input_fusion=[True],                # fold reshape/prefix-slice into input
        ),
        cost_estimate=pl.CostEstimate(
            flops=8 * n_elems,
            transcendentals=n_elems,
            bytes_accessed=2 * n_elems * itemsize,
        ),
    )(x2d)


def gelu(x):
    """Tanh-approx GELU (PyTorch formula), elementwise, any shape, float dtypes.

    Note: inputs are computed in float32 internally (standard on TPU), so
    float64 inputs do not get double-precision math like PyTorch would.
    """
    orig_shape = x.shape
    n = x.size
    if n == 0:
        return x

    x_flat = x.reshape(-1)
    rem = n % _LANES

    if rem == 0:
        # Fast path: contiguous reshape only (free) -> no pad / slice passes.
        out2d = _gelu_slab(x_flat.reshape(n // _LANES, _LANES))
        return out2d.reshape(orig_shape)

    aligned = n - rem
    if aligned == 0:
        # Tiny tensor (<128 elements): not worth a kernel launch.
        return _gelu_jnp(x_flat).reshape(orig_shape)

    # Unaligned path: kernel on the 128-aligned prefix, tiny jnp tail.
    # Avoids padding + slicing the full tensor (extra HBM passes on a
    # purely bandwidth-bound op).
    head = _gelu_slab(x_flat[:aligned].reshape(aligned // _LANES, _LANES)).reshape(-1)
    tail = _gelu_jnp(x_flat[aligned:])
    return jnp.concatenate([head, tail]).reshape(orig_shape)


def _gelu_ref(x):
    # Independent reference: the literal PyTorch formula (tanh form).
    xf = x.astype(jnp.float32)
    y = 0.5 * xf * (1.0 + jnp.tanh(_A * (xf + 0.044715 * xf ** 3)))
    return y.astype(x.dtype)


if __name__ == "__main__":
    key = jax.random.PRNGKey(0)

    # Main check: shape implied by the module usage (batch=2, channels=4, 16x16).
    x = jax.random.normal(key, (2, 4, 16, 16), dtype=jnp.float32)
    out = jax.block_until_ready(gelu(x))
    ref = _gelu_ref(x)
    assert out.shape == x.shape and out.dtype == x.dtype
    assert jnp.allclose(out, ref, atol=1e-5, rtol=1e-5)

    # Secondary checks: unaligned (n % 128 != 0) and tiny (<128 elems) paths.
    for shape in [(3, 50), (5, 7)]:
        key, sub = jax.random.split(key)
        xs = jax.random.normal(sub, shape, dtype=jnp.float32)
        os_ = jax.block_until_ready(gelu(xs))
        assert os_.shape == xs.shape and os_.dtype == xs.dtype
        assert jnp.allclose(os_, _gelu_ref(xs), atol=1e-5, rtol=1e-5)

    print("KERNEL_OK")
</pallas_src>

<mosaic_0001>
module attributes {stable_mosaic.version = 11 : i64} {
  func.func @_gelu_kernel(%arg0: i32, %arg1: memref<16x128xf32, #tpu.memory_space<vmem>>, %arg2: memref<16x128xf32, #tpu.memory_space<vmem>>) attributes {dimension_semantics = [#tpu.dimension_semantics<parallel>], iteration_bounds = array<i64: 1>, scalar_prefetch = 0 : i64, scratch_operands = 0 : i64, tpu.core_type = #tpu.core_type<tc>, window_params = [{transform_indices = @transform_0, window_bounds = array<i64: 16, 128>}, {transform_indices = @transform_1, window_bounds = array<i64: 16, 128>}]} {
    %c0 = arith.constant 0 : index
    %c0_0 = arith.constant 0 : index
    %0 = vector.load %arg1[%c0, %c0_0] : memref<16x128xf32, #tpu.memory_space<vmem>>, vector<16x128xf32>
    %1 = arith.mulf %0, %0 : vector<16x128xf32>
    %cst = arith.constant 0.0713548139 : f32
    %2 = vector.broadcast %cst : f32 to vector<16x128xf32>
    %3 = arith.mulf %2, %1 : vector<16x128xf32>
    %cst_1 = arith.constant 1.59576917 : f32
    %4 = vector.broadcast %cst_1 : f32 to vector<16x128xf32>
    %5 = arith.addf %4, %3 : vector<16x128xf32>
    %6 = arith.mulf %0, %5 : vector<16x128xf32>
    %cst_2 = arith.constant 0.000000e+00 : f32
    %7 = vector.broadcast %cst_2 : f32 to vector<16x128xf32>
    %8 = arith.subf %7, %6 : vector<16x128xf32>
    %9 = math.exp %8 : vector<16x128xf32>
    %cst_3 = arith.constant 1.000000e+00 : f32
    %10 = vector.broadcast %cst_3 : f32 to vector<16x128xf32>
    %11 = arith.addf %10, %9 : vector<16x128xf32>
    %12 = arith.divf %0, %11 : vector<16x128xf32>
    %c0_4 = arith.constant 0 : index
    %c0_5 = arith.constant 0 : index
    %13 = vector.load %arg2[%c0_4, %c0_5] : memref<16x128xf32, #tpu.memory_space<vmem>>, vector<16x128xf32>
    tpu.vector_store %arg2[%c0_4, %c0_5], %12 {strides = array<i32>} : memref<16x128xf32, #tpu.memory_space<vmem>>, vector<16x128xf32>,
    return
  }
  func.func @transform_0(%arg0: i32) -> (i32, i32) {
    %c0_i32 = arith.constant 0 : i32
    %c0_i32_0 = arith.constant 0 : i32
    return %arg0, %c0_i32 : i32, i32
  }
  func.func @transform_1(%arg0: i32) -> (i32, i32) {
    %c0_i32 = arith.constant 0 : i32
    %c0_i32_0 = arith.constant 0 : i32
    return %arg0, %c0_i32 : i32, i32
  }
}

</mosaic_0001>

<llo_original>
// kernel: tpu_custom_call.1
$region0: #{tpu_custom_call.1}
  #allocation0 [shape = 'u32[]', space=smem, size = 0x4, offset = 0x4, fixed_abs, tag = 'smem constant byte address 0x4 - core index']
  #allocation1 [shape = 'u32[144,128]{1,0:T(1,128)}', space=vmem, size = 0x12000, scoped, tag = 'internal scratch']
  %s0 = inlined_call_operand.hbm [shape: f32[16,128], index: 0, kind: input, shape index: {}]
  %s1 = inlined_call_operand.hbm [shape: f32[16,128], index: 1, kind: output, shape index: {}]
  %s2 = sld [smem:[#allocation0]]
  $region18: #{tpu_custom_call.1} parent=0
    _
  %s4 = ssub.s32 1, %s2
  %s5 = scalar_select 0, %s4, %s2
  $region1: #{tpu_custom_call.1} parent=0
    #allocation2 [shape = 'u8[8192]{0}', space=vmem, size = 0x2000, scoped, tag = 'input window, operand 0, single buffered']
    #allocation3 [shape = 's32[1]{0}', space=sflag, size = 0x4, scoped, tag = 'scoped memory for tpu_custom_call.1']
    #allocation4 [shape = 's32[1]{0}', space=sflag, size = 0x4, scoped, tag = 'scoped memory for tpu_custom_call.1']
    #allocation5 [shape = 'u8[8192]{0}', space=vmem, size = 0x2000, scoped, tag = 'output window, operand 0, single buffered']
    %6 = vsyncpa [#allocation3], 0
    %7 = vsyncpa [#allocation4], 0
    // Predicated region
    $region2: #{tpu_custom_call.1} parent=1 // pred_check
      _
    $region3: #{tpu_custom_call.1} parent=1 // pred_check_branch
      %9 = sbr.rel (0) target = $region5
    $region4: #{tpu_custom_call.1} parent=1 // pred_region
      %s11 = ssub.s32 256, 256
      %12 = vsyncadd [#allocation3], %s11
      %s13 = sshll.u32 [#allocation2], 4
      %s14 = int_to_ptr.vmem [resolvable:$true] %s13
      %19 = dma.hbm_to_vmem [thread:$0]  %s0, 256, %s14, [#allocation3], 128, 128, 8
    $region5: #{tpu_custom_call.1} parent=1 // pred_fallthru
      _
    // Predicated region
    $region6: #{tpu_custom_call.1} parent=1 // pred_check
      _
    $region7: #{tpu_custom_call.1} parent=1 // pred_check_branch
      %21 = sbr.rel (0) target = $region9
    $region8: #{tpu_custom_call.1} parent=1 // pred_region
      %22 = dma.done [#allocation3], 256
    $region9: #{tpu_custom_call.1} parent=1 // pred_fallthru
      _
    %v23 = vld [vmem:[#allocation2] sm:$0xff]
    %v24 = vld [vmem:[#allocation2 + $0x8] sm:$0xff]
    %v25 = vmul.f32 %v23, %v23
    %v26 = vmul.f32 %v24, %v24
    %v27 = vmul.f32 %v25, 0.071354814
    %v28 = vmul.f32 %v26, 0.071354814
    %v29 = vadd.f32 %v27, 1.5957692
    %v30 = vadd.f32 %v28, 1.5957692
    %v31 = vmul.f32 %v23, %v29
    %v32 = vmul.f32 %v24, %v30
    %v33 = vsub.f32 0.0, %v31
    %v34 = vsub.f32 0.0, %v32
    %v35 = vmul.f32 %v33, 1.442695
    %v36 = vpow.pop %v35
    %v37 = vmul.f32 %v34, 1.442695
    %v38 = vpow.pop %v37
    %v39 = vadd.f32 %v36, 1.0
    %v40 = vadd.f32 %v38, 1.0
    %v41 = vrcp.pop %v39
    %v42 = vmul.f32 %v23, %v41
    %v43 = vrcp.pop %v40
    %v44 = vmul.f32 %v24, %v43
    %45 = vst [vmem:[#allocation5] sm:$0xff] %v42
    %46 = vst [vmem:[#allocation5 + $0x8] sm:$0xff] %v44
    // Predicated region
    $region10: #{tpu_custom_call.1} parent=1 // pred_check
      _
    $region11: #{tpu_custom_call.1} parent=1 // pred_check_branch
      %48 = sbr.rel (0) target = $region13
    $region12: #{tpu_custom_call.1} parent=1 // pred_region
      %s50 = ssub.s32 256, 256
      %51 = vsyncadd [#allocation4], %s50
      %s52 = sshll.u32 [#allocation5], 4
      %s53 = int_to_ptr.vmem [resolvable:$true] %s52
      %58 = dma.vmem_to_hbm [thread:$0]  %s53, 256, %s1, [#allocation4], 128, 128, 8
    $region13: #{tpu_custom_call.1} parent=1 // pred_fallthru
      _
    // Predicated region
    $region14: #{tpu_custom_call.1} parent=1 // pred_check
      _
    $region15: #{tpu_custom_call.1} parent=1 // pred_check_branch
      %60 = sbr.rel (0) target = $region17
    $region16: #{tpu_custom_call.1} parent=1 // pred_region
      %61 = dma.done [#allocation4], 256
    $region17: #{tpu_custom_call.1} parent=1 // pred_fallthru
      _
    %62 = vsyncpa [#allocation3], 1
    %63 = vsyncpa [#allocation4], 1

</llo_original>
